<compile_context>
chip_gen: v5e
topology: v5e:2x2
jax: 0.10.0
libtpu: 0.0.40
codegen_flags: <defaults>
</compile_context>

<pallas_src>
import jax
import jax.numpy as jnp
from jax.experimental import pallas as pl
from jax.experimental.pallas import tpu as pltpu


_LANE_CANDIDATES = (4096, 2048, 1024, 512, 256, 128)


def _round_up(x, m):
    return -(-x // m) * m


def _sublane_multiple(dtype):
    # Packed sublane tile: f32 -> 8, bf16/f16 -> 16, int8/fp8 -> 32.
    itemsize = jnp.dtype(dtype).itemsize
    return 8 * max(1, 4 // max(1, itemsize))


def _generation_budget():
    """Return (target block bytes per array, vmem_limit_bytes) per TPU generation."""
    vmem_bytes = None
    try:
        vmem_bytes = getattr(pltpu.get_tpu_info(), "vmem_capacity_bytes", None)
    except Exception:
        vmem_bytes = None
    if vmem_bytes is None:
        # Unknown generation: conservative settings, safe on v5e/v6e/v7x.
        return 2 * 1024 * 1024, 40 * 1024 * 1024
    if vmem_bytes >= 100 * 1024 * 1024:
        # v5e / v6e (128 MiB VMEM): 4 MiB blocks -> 32 MiB resident double-buffered.
        return 4 * 1024 * 1024, 64 * 1024 * 1024
    # v7x (64 MiB per TensorCore): 3 MiB blocks -> 24 MiB resident, <=48 MiB cap.
    return 3 * 1024 * 1024, min(48 * 1024 * 1024, (vmem_bytes * 3) // 4)


def _pick_block_rows(rows, lane, itemsize, sub, target_block_bytes):
    """Choose (block_rows, grid_len) for a (rows, lane) slab."""
    budget_rows = max(sub, (target_block_bytes // (lane * itemsize)) // sub * sub)

    # Tiny slabs: a single block; pipelining cannot pay for itself.
    if rows <= 2 * sub:
        return rows, 1

    # Force >=2 grid steps (>=4 once there is enough data) so DMA / compute /
    # writeback overlap and both v7x TensorCores get work; keep the grid even.
    min_steps = 4 if rows >= 4 * sub else 2
    steps = max(min_steps, pl.cdiv(rows, budget_rows))
    if steps % 2:
        steps += 1

    hi = max(sub, min(budget_rows, _round_up(pl.cdiv(rows, steps), sub)))
    lo = max(sub, (hi // 2) // sub * sub)

    best_score, best_br = None, hi
    br = hi
    while br >= lo:
        g = pl.cdiv(rows, br)
        # Priority: even grid (TC balance) > exact division (unmasked tail) > big block.
        score = (g % 2 == 0, rows % br == 0, br)
        if best_score is None or score > best_score:
            best_score, best_br = score, br
        br -= sub
    return best_br, pl.cdiv(rows, best_br)


def _bag_kernel(p_ref, i_ref, d_ref, o_ref):
    # Compute in f32 (free under the DMA time), cast only at the store.
    p = p_ref[...].astype(jnp.float32)
    i = i_ref[...].astype(jnp.float32)
    d = d_ref[...].astype(jnp.float32)
    edge_att = jax.nn.sigmoid(d)
    # edge_att * p + (1 - edge_att) * i  ==  i + edge_att * (p - i)
    o_ref[...] = (i + edge_att * (p - i)).astype(o_ref.dtype)


def bag(p, i, d):
    """Pallas implementation of Bag.forward(p, i, d). All inputs same shape/dtype."""
    assert p.shape == i.shape == d.shape, "Bag inputs must have identical shapes"
    assert p.dtype == i.dtype == d.dtype, "Bag inputs must have identical dtypes"
    orig_shape = p.shape
    dtype = p.dtype
    itemsize = jnp.dtype(dtype).itemsize
    total = p.size
    sub = _sublane_multiple(dtype)
    block_bytes, vmem_limit = _generation_budget()

    # Pick a lane width (multiple of 128).  First pass prefers candidates that
    # also leave rows a multiple of the sublane tile (full-vreg layout).
    lane = None
    for want_sub_rows in (True, False):
        for cand in _LANE_CANDIDATES:
            if total % cand == 0 and (not want_sub_rows or (total // cand) % sub == 0):
                lane = cand
                break
        if lane is not None:
            break

    if lane is not None:
        rows = total // lane
    else:
        # Odd sizes (not a multiple of 128): avoid pad/slice extra HBM passes
        # by viewing the tensor as (prod(leading), last_dim) and blocking rows
        # with the full last dim (ragged last row block is masked in-kernel).
        lane = orig_shape[-1] if len(orig_shape) > 1 else total
        rows = total // lane

    slabs = [x.reshape(rows, lane) for x in (p, i, d)]
    block_rows, grid_len = _pick_block_rows(rows, lane, itemsize, sub, block_bytes)

    spec = pl.BlockSpec((block_rows, lane), lambda r: (r, 0))
    out2 = pl.pallas_call(
        _bag_kernel,
        out_shape=jax.ShapeDtypeStruct((rows, lane), dtype),
        grid=(grid_len,),
        in_specs=[spec, spec, spec],
        out_specs=spec,
        compiler_params=pltpu.CompilerParams(
            dimension_semantics=("parallel",),
            vmem_limit_bytes=vmem_limit,
        ),
    )(*slabs)
    return out2.reshape(orig_shape)


def _bag_ref_f32(p, i, d):
    p32 = p.astype(jnp.float32)
    i32 = i.astype(jnp.float32)
    d32 = d.astype(jnp.float32)
    edge_att = jax.nn.sigmoid(d32)
    return edge_att * p32 + (1.0 - edge_att) * i32


def _check(shape, key, dtype=jnp.float32, atol=1e-5, rtol=1e-5):
    kp, ki, kd = jax.random.split(key, 3)
    p = jax.random.normal(kp, shape, dtype=jnp.float32).astype(dtype)
    i = jax.random.normal(ki, shape, dtype=jnp.float32).astype(dtype)
    d = jax.random.normal(kd, shape, dtype=jnp.float32).astype(dtype)

    out = bag(p, i, d)
    jax.block_until_ready(out)

    ref = _bag_ref_f32(p, i, d)
    assert out.shape == shape
    assert jnp.allclose(out.astype(jnp.float32), ref, atol=atol, rtol=rtol), (
        f"mismatch vs reference for shape={shape} dtype={dtype}"
    )


if __name__ == "__main__":
    key = jax.random.PRNGKey(0)
    k1, k2, k3, k4 = jax.random.split(key, 4)

    # Primary small NCHW case (conv tensors feeding Bag).
    _check((2, 4, 16, 16), k1)
    # Larger case: exercises the multi-step even grid (pipeline + v7x 2-TC split).
    _check((2, 64, 64, 64), k2)
    # Odd size: exercises the pad-free fallback path (no extra HBM passes).
    _check((3, 5, 7, 11), k3)
    # bf16 inputs: kernel computes in f32 and casts at the store.
    _check((2, 4, 16, 16), k4, dtype=jnp.bfloat16, atol=5e-2, rtol=5e-2)

    print("KERNEL_OK")
</pallas_src>

<mosaic_0001>
module attributes {stable_mosaic.version = 11 : i64} {
  func.func @_bag_kernel(%arg0: i32, %arg1: memref<8x256xf32, #tpu.memory_space<vmem>>, %arg2: memref<8x256xf32, #tpu.memory_space<vmem>>, %arg3: memref<8x256xf32, #tpu.memory_space<vmem>>, %arg4: memref<8x256xf32, #tpu.memory_space<vmem>>) attributes {dimension_semantics = [#tpu.dimension_semantics<parallel>], iteration_bounds = array<i64: 1>, scalar_prefetch = 0 : i64, scratch_operands = 0 : i64, tpu.core_type = #tpu.core_type<tc>, window_params = [{transform_indices = @transform_0, window_bounds = array<i64: 8, 256>}, {transform_indices = @transform_1, window_bounds = array<i64: 8, 256>}, {transform_indices = @transform_2, window_bounds = array<i64: 8, 256>}, {transform_indices = @transform_3, window_bounds = array<i64: 8, 256>}]} {
    %c0 = arith.constant 0 : index
    %c0_0 = arith.constant 0 : index
    %0 = vector.load %arg1[%c0, %c0_0] : memref<8x256xf32, #tpu.memory_space<vmem>>, vector<8x256xf32>
    %c0_1 = arith.constant 0 : index
    %c0_2 = arith.constant 0 : index
    %1 = vector.load %arg2[%c0_1, %c0_2] : memref<8x256xf32, #tpu.memory_space<vmem>>, vector<8x256xf32>
    %c0_3 = arith.constant 0 : index
    %c0_4 = arith.constant 0 : index
    %2 = vector.load %arg3[%c0_3, %c0_4] : memref<8x256xf32, #tpu.memory_space<vmem>>, vector<8x256xf32>
    %3 = arith.negf %2 : vector<8x256xf32>
    %4 = math.exp %3 : vector<8x256xf32>
    %cst = arith.constant 1.000000e+00 : f32
    %5 = vector.broadcast %cst : f32 to vector<8x256xf32>
    %6 = arith.addf %5, %4 : vector<8x256xf32>
    %7 = arith.divf %5, %6 : vector<8x256xf32>
    %8 = arith.subf %0, %1 : vector<8x256xf32>
    %9 = arith.mulf %7, %8 : vector<8x256xf32>
    %10 = arith.addf %1, %9 : vector<8x256xf32>
    %c0_5 = arith.constant 0 : index
    %c0_6 = arith.constant 0 : index
    %11 = vector.load %arg4[%c0_5, %c0_6] : memref<8x256xf32, #tpu.memory_space<vmem>>, vector<8x256xf32>
    tpu.vector_store %arg4[%c0_5, %c0_6], %10 {strides = array<i32>} : memref<8x256xf32, #tpu.memory_space<vmem>>, vector<8x256xf32>,
    return
  }
  func.func @transform_0(%arg0: i32) -> (i32, i32) {
    %c0_i32 = arith.constant 0 : i32
    %c0_i32_0 = arith.constant 0 : i32
    return %arg0, %c0_i32 : i32, i32
  }
  func.func @transform_1(%arg0: i32) -> (i32, i32) {
    %c0_i32 = arith.constant 0 : i32
    %c0_i32_0 = arith.constant 0 : i32
    return %arg0, %c0_i32 : i32, i32
  }
  func.func @transform_2(%arg0: i32) -> (i32, i32) {
    %c0_i32 = arith.constant 0 : i32
    %c0_i32_0 = arith.constant 0 : i32
    return %arg0, %c0_i32 : i32, i32
  }
  func.func @transform_3(%arg0: i32) -> (i32, i32) {
    %c0_i32 = arith.constant 0 : i32
    %c0_i32_0 = arith.constant 0 : i32
    return %arg0, %c0_i32 : i32, i32
  }
}

</mosaic_0001>

<llo_original>
// kernel: tpu_custom_call.1
$region0: #{tpu_custom_call.1}
  #allocation0 [shape = 'u32[]', space=smem, size = 0x4, offset = 0x4, fixed_abs, tag = 'smem constant byte address 0x4 - core index']
  #allocation1 [shape = 'u32[72,128]{1,0:T(1,128)}', space=vmem, size = 0x9000, scoped, tag = 'internal scratch']
  %s0 = inlined_call_operand.hbm [shape: f32[8,256], index: 0, kind: input, shape index: {}]
  %s1 = inlined_call_operand.hbm [shape: f32[8,256], index: 1, kind: input, shape index: {}]
  %s2 = inlined_call_operand.hbm [shape: f32[8,256], index: 2, kind: input, shape index: {}]
  %s3 = inlined_call_operand.hbm [shape: f32[8,256], index: 3, kind: output, shape index: {}]
  %s4 = sld [smem:[#allocation0]]
  $region34: #{tpu_custom_call.1} parent=0
    _
  %s6 = ssub.s32 1, %s4
  %s7 = scalar_select 0, %s6, %s4
  $region1: #{tpu_custom_call.1} parent=0
    #allocation2 [shape = 'u8[8192]{0}', space=vmem, size = 0x2000, scoped, tag = 'input window, operand 0, single buffered']
    #allocation3 [shape = 's32[1]{0}', space=sflag, size = 0x4, scoped, tag = 'scoped memory for tpu_custom_call.1']
    #allocation4 [shape = 's32[1]{0}', space=sflag, size = 0x4, scoped, tag = 'scoped memory for tpu_custom_call.1']
    #allocation5 [shape = 'u8[8192]{0}', space=vmem, size = 0x2000, scoped, tag = 'input window, operand 1, single buffered']
    #allocation6 [shape = 's32[1]{0}', space=sflag, size = 0x4, scoped, tag = 'scoped memory for tpu_custom_call.1']
    #allocation7 [shape = 'u8[8192]{0}', space=vmem, size = 0x2000, scoped, tag = 'input window, operand 2, single buffered']
    #allocation8 [shape = 'u8[8192]{0}', space=vmem, size = 0x2000, scoped, tag = 'output window, operand 0, single buffered']
    %8 = vsyncpa [#allocation3], 0
    %9 = vsyncpa [#allocation6], 0
    %10 = vsyncpa [#allocation4], 0
    // Predicated region
    $region2: #{tpu_custom_call.1} parent=1 // pred_check
      _
    $region3: #{tpu_custom_call.1} parent=1 // pred_check_branch
      %12 = sbr.rel (0) target = $region5
    $region4: #{tpu_custom_call.1} parent=1 // pred_region
      %14 = vsyncadd [#allocation3], 0
      %s16 = sshll.u32 %s0, 4
      %s17 = int_to_ptr.hbm [resolvable:$true] %s16
      %s18 = sshll.u32 [#allocation2], 4
      %s19 = int_to_ptr.vmem [resolvable:$true] %s18
      %21 = dma.hbm_to_vmem [thread:$0]  %s17, 256, %s19, [#allocation3]
    $region5: #{tpu_custom_call.1} parent=1 // pred_fallthru
      _
    // Predicated region
    $region6: #{tpu_custom_call.1} parent=1 // pred_check
      _
    $region7: #{tpu_custom_call.1} parent=1 // pred_check_branch
      %23 = sbr.rel (0) target = $region9
    $region8: #{tpu_custom_call.1} parent=1 // pred_region
      %25 = vsyncadd [#allocation6], 0
      %s27 = sshll.u32 %s1, 4
      %s28 = int_to_ptr.hbm [resolvable:$true] %s27
      %s29 = sshll.u32 [#allocation5], 4
      %s30 = int_to_ptr.vmem [resolvable:$true] %s29
      %32 = dma.hbm_to_vmem [thread:$0]  %s28, 256, %s30, [#allocation6]
    $region9: #{tpu_custom_call.1} parent=1 // pred_fallthru
      _
    // Predicated region
    $region10: #{tpu_custom_call.1} parent=1 // pred_check
      _
    $region11: #{tpu_custom_call.1} parent=1 // pred_check_branch
      %34 = sbr.rel (0) target = $region13
    $region12: #{tpu_custom_call.1} parent=1 // pred_region
      %36 = vsyncadd [#allocation6], 0
      %s38 = sshll.u32 %s2, 4
      %s39 = int_to_ptr.hbm [resolvable:$true] %s38
      %s40 = sshll.u32 [#allocation7], 4
      %s41 = int_to_ptr.vmem [resolvable:$true] %s40
      %43 = dma.hbm_to_vmem [thread:$0]  %s39, 256, %s41, [#allocation6]
    $region13: #{tpu_custom_call.1} parent=1 // pred_fallthru
      _
    // Predicated region
    $region14: #{tpu_custom_call.1} parent=1 // pred_check
      _
    $region15: #{tpu_custom_call.1} parent=1 // pred_check_branch
      %45 = sbr.rel (0) target = $region17
    $region16: #{tpu_custom_call.1} parent=1 // pred_region
      %47 = dma.done [#allocation3], 256
    $region17: #{tpu_custom_call.1} parent=1 // pred_fallthru
      _
    // Predicated region
    $region18: #{tpu_custom_call.1} parent=1 // pred_check
      _
    $region19: #{tpu_custom_call.1} parent=1 // pred_check_branch
      %49 = sbr.rel (0) target = $region21
    $region20: #{tpu_custom_call.1} parent=1 // pred_region
      %51 = dma.done [#allocation6], 256
    $region21: #{tpu_custom_call.1} parent=1 // pred_fallthru
      _
    // Predicated region
    $region22: #{tpu_custom_call.1} parent=1 // pred_check
      _
    $region23: #{tpu_custom_call.1} parent=1 // pred_check_branch
      %53 = sbr.rel (0) target = $region25
    $region24: #{tpu_custom_call.1} parent=1 // pred_region
      %55 = dma.done [#allocation6], 256
    $region25: #{tpu_custom_call.1} parent=1 // pred_fallthru
      _
    %v56 = vld [vmem:[#allocation2] sm:$0xff]
    %v57 = vld [vmem:[#allocation2 + $0x8] sm:$0xff]
    %v58 = vld [vmem:[#allocation5] sm:$0xff]
    %v59 = vld [vmem:[#allocation5 + $0x8] sm:$0xff]
    %v60 = vld [vmem:[#allocation7] sm:$0xff]
    %v61 = vld [vmem:[#allocation7 + $0x8] sm:$0xff]
    %v62 = vxor.u32 %v60, 2147483648
    %v63 = vxor.u32 %v61, 2147483648
    %v64 = vmul.f32 %v62, 1.442695
    %v65 = vpow.pop %v64
    %v66 = vmul.f32 %v63, 1.442695
    %v67 = vpow.pop %v66
    %v68 = vadd.f32 %v65, 1.0
    %v69 = vadd.f32 %v67, 1.0
    %v70 = vrcp.pop %v68
    %v71 = vmul.f32 %v68, %v70
    %v72 = vsub.f32 1.0, %v71
    %v73 = vmul.f32 %v70, %v72
    %v74 = vadd.f32 %v70, %v73
    %vm75 = vweird.f32 %v68
    %vm76 = vweird.f32 %v70
    %vm77 = vmor %vm75, %vm76
    %v78 = vsel %vm77, %v70, %v74
    %v79 = vand.u32 2147483647, %v68
    %vm80 = vcmp.eq.f32.partialorder %v79, 8.507059e+37
    %v81 = vand.u32 %v68, 2147483648
    %v82 = vor.u32 1.1754944e-38, %v81
    %v83 = vsel %vm80, %v82, %v78
    %v84 = vmul.f32 1.0, %v83
    %v85 = vrcp.pop %v69
    %v86 = vmul.f32 %v69, %v85
    %v87 = vsub.f32 1.0, %v86
    %v88 = vmul.f32 %v85, %v87
    %v89 = vadd.f32 %v85, %v88
    %vm90 = vweird.f32 %v69
    %vm91 = vweird.f32 %v85
    %vm92 = vmor %vm90, %vm91
    %v93 = vsel %vm92, %v85, %v89
    %v94 = vand.u32 2147483647, %v69
    %vm95 = vcmp.eq.f32.partialorder %v94, 8.507059e+37
    %v96 = vand.u32 %v69, 2147483648
    %v97 = vor.u32 1.1754944e-38, %v96
    %v98 = vsel %vm95, %v97, %v93
    %v99 = vmul.f32 1.0, %v98
    %v100 = vsub.f32 %v56, %v58
    %v101 = vsub.f32 %v57, %v59
    %v102 = vmul.f32 %v84, %v100
    %v103 = vmul.f32 %v99, %v101
    %v104 = vadd.f32 %v58, %v102
    %v105 = vadd.f32 %v59, %v103
    %106 = vst [vmem:[#allocation8] sm:$0xff] %v104
    %107 = vst [vmem:[#allocation8 + $0x8] sm:$0xff] %v105
    // Predicated region
    $region26: #{tpu_custom_call.1} parent=1 // pred_check
      _
    $region27: #{tpu_custom_call.1} parent=1 // pred_check_branch
      %109 = sbr.rel (0) target = $region29
    $region28: #{tpu_custom_call.1} parent=1 // pred_region
      %111 = vsyncadd [#allocation4], 0
      %s113 = sshll.u32 [#allocation8], 4
      %s114 = int_to_ptr.vmem [resolvable:$true] %s113
      %s115 = sshll.u32 %s3, 4
      %s116 = int_to_ptr.hbm [resolvable:$true] %s115
      %118 = dma.vmem_to_hbm [thread:$0]  %s114, 256, %s116, [#allocation4]
    $region29: #{tpu_custom_call.1} parent=1 // pred_fallthru
      _
    // Predicated region
    $region30: #{tpu_custom_call.1} parent=1 // pred_check
      _
    $region31: #{tpu_custom_call.1} parent=1 // pred_check_branch
      %120 = sbr.rel (0) target = $region33
    $region32: #{tpu_custom_call.1} parent=1 // pred_region
      %122 = dma.done [#allocation4], 256
    $region33: #{tpu_custom_call.1} parent=1 // pred_fallthru
      _
    %123 = vsyncpa [#allocation3], 1
    %124 = vsyncpa [#allocation6], 1
    %125 = vsyncpa [#allocation4], 1

</llo_original>
